<compile_context>
chip_gen: v7x
topology: tpu7x:2x2x1
jax: 0.10.0
libtpu: 0.0.40
codegen_flags: <defaults>
</compile_context>

<pallas_src>
import functools

import jax
import jax.numpy as jnp
from jax.experimental import pallas as pl
from jax.experimental.pallas import tpu as pltpu  # noqa: F401  (TPU backend)


def _conv_relu_kernel(x_ref, w_ref, b_ref, o_ref, *, KH, KW, Wp, span):
    """Whole batch in one step.

    x_ref : (N*Cin, Hp*Wp + KW-1)      pre-padded, row-major-flattened input
    w_ref : (N*Cout, KH*KW*N*Cin)      block-diag (groups x batch) weights,
                                       columns ordered (kh, kw, n, ci)
    b_ref : (N*Cout, 1)                bias (replicated per batch element)
    o_ref : (N*Cout, Ho*Wp)            activation incl. pad-width garbage cols
    """
    x = x_ref[...]

    # "wide" im2col: each (kh, kw) contributes one lane-shifted slice that
    # already carries all batch elements and input channels on its sublanes.
    cols = []
    for kh in range(KH):
        for kw in range(KW):
            off = kh * Wp + kw
            cols.append(x[:, off:off + span])          # (N*Cin, span)
    x_col = jnp.concatenate(cols, axis=0)              # (KH*KW*N*Cin, span)

    # Single MXU matmul for the whole grouped, batched conv + bias + ReLU.
    acc = jnp.dot(w_ref[...], x_col, preferred_element_type=jnp.float32)
    o_ref[...] = jnp.maximum(acc + b_ref[...], 0.0).astype(o_ref.dtype)


def conv2d_relu_pallas(x_nchw, w_oihw, bias, *, groups, padding):
    N, Cin, H, W = x_nchw.shape
    Cout, cin_per_g, KH, KW = w_oihw.shape
    assert Cin == cin_per_g * groups and Cout % groups == 0, (
        "grouped conv requires Cin % groups == 0 and Cout % groups == 0")
    cout_per_g = Cout // groups

    Hp, Wp = H + 2 * padding, W + 2 * padding
    Ho, Wo = Hp - KH + 1, Wp - KW + 1
    span = Ho * Wp                      # kernel works on Wp-wide rows
    L = Hp * Wp + (KW - 1)              # flat width incl. tail zeros

    # ---- lane-dense, pre-padded input: (N*Cin, Hp*Wp + KW-1) ---------------
    x_pad = jnp.pad(x_nchw, ((0, 0), (0, 0),
                             (padding, padding), (padding, padding)))
    x_flat = x_pad.reshape(N * Cin, Hp * Wp)
    x_flat = jnp.pad(x_flat, ((0, 0), (0, KW - 1)))            # (N*Cin, L)

    # ---- weights: block-diagonal over groups, columns ordered (kh, kw, ci) -
    w_cd = jnp.zeros((Cout, KH, KW, Cin), w_oihw.dtype)
    for g in range(groups):
        blk = jnp.transpose(w_oihw[g * cout_per_g:(g + 1) * cout_per_g],
                            (0, 2, 3, 1))          # (cout_g, KH, KW, cin_g)
        w_cd = w_cd.at[g * cout_per_g:(g + 1) * cout_per_g, :, :,
                       g * cin_per_g:(g + 1) * cin_per_g].set(blk)

    # ---- then block-diagonal over batch -> (N*Cout, KH*KW*N*Cin) -----------
    w_big = jnp.zeros((N, Cout, KH, KW, N, Cin), w_oihw.dtype)
    for n in range(N):
        w_big = w_big.at[n, :, :, :, n, :].set(w_cd)
    w_mat = w_big.reshape(N * Cout, KH * KW * N * Cin)

    b2 = jnp.tile(bias.reshape(1, Cout), (N, 1)).reshape(N * Cout, 1)

    kernel = functools.partial(_conv_relu_kernel,
                               KH=KH, KW=KW, Wp=Wp, span=span)

    # Single grid step, whole-array VMEM blocks (tiny problem, no tiling).
    out_flat = pl.pallas_call(
        kernel,
        out_shape=jax.ShapeDtypeStruct((N * Cout, Ho * Wp), x_nchw.dtype),
    )(x_flat, w_mat, b2)

    # NCHW un-flatten + drop the pad-width garbage columns (cheap XLA
    # reshape + slice, fuses with downstream consumers).
    return out_flat.reshape(N, Cout, Ho, Wp)[..., :Wo]


def _reference(x_nchw, w_oihw, bias, *, groups, padding):
    out = jax.lax.conv_general_dilated(
        x_nchw, w_oihw,
        window_strides=(1, 1),
        padding=((padding, padding), (padding, padding)),
        dimension_numbers=("NCHW", "OIHW", "NCHW"),
        feature_group_count=groups)
    out = out + bias[None, :, None, None]
    return jnp.maximum(out, 0.0)


if __name__ == "__main__":
    key = jax.random.PRNGKey(0)
    k_x, k_w, k_b = jax.random.split(key, 3)

    N, Cin, H, W = 2, 4, 16, 16
    Cout, groups, K, padding = 16, 2, 3, 2
    cin_per_g = Cin // groups

    x = jax.random.normal(k_x, (N, Cin, H, W), dtype=jnp.float32)
    # Deterministic "kaiming-ish" init for Conv2d weights/bias.
    fan_in = cin_per_g * K * K
    bound = 1.0 / (fan_in ** 0.5)
    w = jax.random.uniform(k_w, (Cout, cin_per_g, K, K),
                           minval=-bound, maxval=bound, dtype=jnp.float32)
    b = jax.random.uniform(k_b, (Cout,), minval=-bound, maxval=bound,
                           dtype=jnp.float32)

    out = conv2d_relu_pallas(x, w, b, groups=groups, padding=padding)
    out = jax.block_until_ready(out)

    ref = _reference(x, w, b, groups=groups, padding=padding)
    assert out.shape == ref.shape, (out.shape, ref.shape)
    assert jnp.max(jnp.abs(out - ref)) < 1e-4

    print("KERNEL_OK")
</pallas_src>

<mosaic_0001>
module attributes {stable_mosaic.version = 11 : i64} {
  func.func @_conv_relu_kernel(%arg0: memref<8x402xf32, #tpu.memory_space<vmem>>, %arg1: memref<32x72xf32, #tpu.memory_space<vmem>>, %arg2: memref<32x1xf32, #tpu.memory_space<vmem>>, %arg3: memref<32x360xf32, #tpu.memory_space<vmem>>) attributes {dimension_semantics = [], scalar_prefetch = 0 : i64, scratch_operands = 0 : i64, tpu.core_type = #tpu.core_type<tc>} {
    %c0 = arith.constant 0 : index
    %c0_0 = arith.constant 0 : index
    %0 = vector.load %arg0[%c0, %c0_0] : memref<8x402xf32, #tpu.memory_space<vmem>>, vector<8x402xf32>
    %1 = vector.extract_strided_slice %0 {offsets = [0, 0], sizes = [8, 360], strides = [1, 1]} : vector<8x402xf32> to vector<8x360xf32>
    %2 = vector.extract_strided_slice %0 {offsets = [0, 1], sizes = [8, 360], strides = [1, 1]} : vector<8x402xf32> to vector<8x360xf32>
    %3 = vector.extract_strided_slice %0 {offsets = [0, 2], sizes = [8, 360], strides = [1, 1]} : vector<8x402xf32> to vector<8x360xf32>
    %4 = vector.extract_strided_slice %0 {offsets = [0, 20], sizes = [8, 360], strides = [1, 1]} : vector<8x402xf32> to vector<8x360xf32>
    %5 = vector.extract_strided_slice %0 {offsets = [0, 21], sizes = [8, 360], strides = [1, 1]} : vector<8x402xf32> to vector<8x360xf32>
    %6 = vector.extract_strided_slice %0 {offsets = [0, 22], sizes = [8, 360], strides = [1, 1]} : vector<8x402xf32> to vector<8x360xf32>
    %7 = vector.extract_strided_slice %0 {offsets = [0, 40], sizes = [8, 360], strides = [1, 1]} : vector<8x402xf32> to vector<8x360xf32>
    %8 = vector.extract_strided_slice %0 {offsets = [0, 41], sizes = [8, 360], strides = [1, 1]} : vector<8x402xf32> to vector<8x360xf32>
    %9 = vector.extract_strided_slice %0 {offsets = [0, 42], sizes = [8, 360], strides = [1, 1]} : vector<8x402xf32> to vector<8x360xf32>
    %10 = tpu.concatenate %1, %2, %3, %4, %5, %6, %7, %8, %9 in 0 : vector<8x360xf32>, vector<8x360xf32>, vector<8x360xf32>, vector<8x360xf32>, vector<8x360xf32>, vector<8x360xf32>, vector<8x360xf32>, vector<8x360xf32>, vector<8x360xf32> -> vector<72x360xf32>
    %c0_1 = arith.constant 0 : index
    %c0_2 = arith.constant 0 : index
    %11 = vector.load %arg1[%c0_1, %c0_2] : memref<32x72xf32, #tpu.memory_space<vmem>>, vector<32x72xf32>
    %cst = arith.constant dense<0.000000e+00> : vector<32x360xf32>
    %12 = tpu.matmul %11, %10, %cst {dimension_numbers = #tpu.dot_dimension_numbers<[1], [0], [0], [1], [0, 0, 1, 1], [], []>} : vector<32x72xf32>, vector<72x360xf32>, vector<32x360xf32> -> vector<32x360xf32>
    %c0_3 = arith.constant 0 : index
    %c0_4 = arith.constant 0 : index
    %13 = vector.load %arg2[%c0_3, %c0_4] : memref<32x1xf32, #tpu.memory_space<vmem>>, vector<32x1xf32>
    %14 = vector.broadcast %13 : vector<32x1xf32> to vector<32x360xf32>
    %15 = arith.addf %12, %14 : vector<32x360xf32>
    %cst_5 = arith.constant 0.000000e+00 : f32
    %16 = vector.broadcast %cst_5 : f32 to vector<32x360xf32>
    %17 = arith.maximumf %15, %16 : vector<32x360xf32>
    %c0_6 = arith.constant 0 : index
    %c0_7 = arith.constant 0 : index
    %18 = vector.load %arg3[%c0_6, %c0_7] : memref<32x360xf32, #tpu.memory_space<vmem>>, vector<32x360xf32>
    tpu.vector_store %arg3[%c0_6, %c0_7], %17 {strides = array<i32>} : memref<32x360xf32, #tpu.memory_space<vmem>>, vector<32x360xf32>,
    return
  }
}

</mosaic_0001>

<llo_original>
// kernel: tpu_custom_call.1
$region0: #{tpu_custom_call.1}
  #allocation0 [shape = 'u32[]', space=smem, size = 0x4, offset = 0x4, fixed_abs, tag = 'smem constant byte address 0x4 - core index']
  #allocation1 [shape = 'u32[144,128]{1,0:T(1,128)}', space=vmem, size = 0x12000, scoped, tag = 'internal scratch']
  %s0 = inlined_call_operand.vmem [shape: f32[8,402], index: 0, kind: input, shape index: {}]
  %s1 = inlined_call_operand.hbm [shape: f32[32,72], index: 1, kind: input, shape index: {}]
  %s2 = inlined_call_operand.vmem [shape: f32[32,1], index: 2, kind: input, shape index: {}]
  %s3 = inlined_call_operand.hbm [shape: f32[32,360], index: 3, kind: output, shape index: {}]
  %s4 = sld [smem:[#allocation0]]
  $region26: #{tpu_custom_call.1} parent=0
    _
  %s6 = ssub.s32 1, %s4
  %s7 = scalar_select 0, %s6, %s4
  $region1: #{tpu_custom_call.1} parent=0
    #allocation2 [shape = 'u8[16384]{0}', space=vmem, size = 0x4000, scoped, tag = 'input window, operand 1, single buffered']
    #allocation3 [shape = 's32[1]{0}', space=sflag, size = 0x4, scoped, tag = 'scoped memory for tpu_custom_call.1']
    #allocation4 [shape = 's32[1]{0}', space=sflag, size = 0x4, scoped, tag = 'scoped memory for tpu_custom_call.1']
    #allocation5 [shape = 'u8[49152]{0}', space=vmem, size = 0xc000, scoped, tag = 'output window, operand 0, single buffered']
    %8 = vsyncpa [#allocation3], 0
    %9 = vsyncpa [#allocation4], 0
    // Predicated region
    $region2: #{tpu_custom_call.1} parent=1 // pred_check
      _
    $region3: #{tpu_custom_call.1} parent=1 // pred_check_branch
      %11 = sbr.rel (0) target = $region5
    $region4: #{tpu_custom_call.1} parent=1 // pred_region
      _
    $region5: #{tpu_custom_call.1} parent=1 // pred_fallthru
      _
    // Predicated region
    $region6: #{tpu_custom_call.1} parent=1 // pred_check
      _
    $region7: #{tpu_custom_call.1} parent=1 // pred_check_branch
      %13 = sbr.rel (0) target = $region9
    $region8: #{tpu_custom_call.1} parent=1 // pred_region
      %s15 = ssub.s32 512, 512
      %16 = vsyncadd [#allocation3], %s15
      %s17 = sshll.u32 [#allocation2], 4
      %s18 = int_to_ptr.vmem [resolvable:$true] %s17
      %23 = dma.hbm_to_vmem [thread:$0]  %s1, 512, %s18, [#allocation3], 128, 128, 8
    $region9: #{tpu_custom_call.1} parent=1 // pred_fallthru
      _
    // Predicated region
    $region10: #{tpu_custom_call.1} parent=1 // pred_check
      _
    $region11: #{tpu_custom_call.1} parent=1 // pred_check_branch
      %25 = sbr.rel (0) target = $region13
    $region12: #{tpu_custom_call.1} parent=1 // pred_region
      _
    $region13: #{tpu_custom_call.1} parent=1 // pred_fallthru
      _
    // Predicated region
    $region14: #{tpu_custom_call.1} parent=1 // pred_check
      _
    $region15: #{tpu_custom_call.1} parent=1 // pred_check_branch
      %27 = sbr.rel (0) target = $region17
    $region16: #{tpu_custom_call.1} parent=1 // pred_region
      %28 = dma.done [#allocation3], 512
    $region17: #{tpu_custom_call.1} parent=1 // pred_fallthru
      _
    %v29 = vld [vmem:[%s0] sm:$0xff]
    %v30 = vld [vmem:[%s0 + $0x8] sm:$0xff]
    %v31 = vld [vmem:[%s0 + $0x10] sm:$0xff]
    %v32 = vld [vmem:[%s0 + $0x18] sm:$0xff]
    %36 = vrot.lane.b32.xlu0 %v29, 127
    %v37 = vpop.permute.xlu0 %36
    %38 = vrot.lane.b32.xlu0 %v30, 127
    %v39 = vpop.permute.xlu0 %38
    %40 = vrot.lane.b32.xlu0 %v31, 127
    %v41 = vpop.permute.xlu0 %40
    %vm42 = vcmask 1039360
    %v43 = vsel %vm42, %v37, %v39
    %v44 = vsel %vm42, %v39, %v41
    %48 = vrot.lane.b32.xlu0 %v29, 126
    %v49 = vpop.permute.xlu0 %48
    %50 = vrot.lane.b32.xlu0 %v30, 126
    %v51 = vpop.permute.xlu0 %50
    %52 = vrot.lane.b32.xlu0 %v31, 126
    %v53 = vpop.permute.xlu0 %52
    %vm54 = vcmask 1031168
    %v55 = vsel %vm54, %v49, %v51
    %v56 = vsel %vm54, %v51, %v53
    %60 = vrot.lane.b32.xlu0 %v29, 108
    %v61 = vpop.permute.xlu0 %60
    %62 = vrot.lane.b32.xlu0 %v30, 108
    %v63 = vpop.permute.xlu0 %62
    %64 = vrot.lane.b32.xlu0 %v31, 108
    %v65 = vpop.permute.xlu0 %64
    %vm66 = vcmask 883712
    %v67 = vsel %vm66, %v61, %v63
    %v68 = vsel %vm66, %v63, %v65
    %72 = vrot.lane.b32.xlu0 %v29, 107
    %v73 = vpop.permute.xlu0 %72
    %74 = vrot.lane.b32.xlu0 %v30, 107
    %v75 = vpop.permute.xlu0 %74
    %76 = vrot.lane.b32.xlu0 %v31, 107
    %v77 = vpop.permute.xlu0 %76
    %vm78 = vcmask 875520
    %v79 = vsel %vm78, %v73, %v75
    %v80 = vsel %vm78, %v75, %v77
    %84 = vrot.lane.b32.xlu0 %v29, 106
    %v85 = vpop.permute.xlu0 %84
    %86 = vrot.lane.b32.xlu0 %v30, 106
    %v87 = vpop.permute.xlu0 %86
    %88 = vrot.lane.b32.xlu0 %v31, 106
    %v89 = vpop.permute.xlu0 %88
    %vm90 = vcmask 867328
    %v91 = vsel %vm90, %v85, %v87
    %v92 = vsel %vm90, %v87, %v89
    %97 = vrot.lane.b32.xlu0 %v29, 88
    %v98 = vpop.permute.xlu0 %97
    %99 = vrot.lane.b32.xlu0 %v30, 88
    %v100 = vpop.permute.xlu0 %99
    %101 = vrot.lane.b32.xlu0 %v31, 88
    %v102 = vpop.permute.xlu0 %101
    %103 = vrot.lane.b32.xlu0 %v32, 88
    %v104 = vpop.permute.xlu0 %103
    %vm105 = vcmask 719872
    %v106 = vsel %vm105, %v98, %v100
    %v107 = vsel %vm105, %v100, %v102
    %v108 = vsel %vm105, %v102, %v104
    %112 = vrot.lane.b32.xlu0 %v29, 87
    %v113 = vpop.permute.xlu0 %112
    %114 = vrot.lane.b32.xlu0 %v30, 87
    %v115 = vpop.permute.xlu0 %114
    %116 = vrot.lane.b32.xlu0 %v31, 87
    %v117 = vpop.permute.xlu0 %116
    %118 = vrot.lane.b32.xlu0 %v32, 87
    %v119 = vpop.permute.xlu0 %118
    %vm120 = vcmask 711680
    %v121 = vsel %vm120, %v113, %v115
    %v122 = vsel %vm120, %v115, %v117
    %v123 = vsel %vm120, %v117, %v119
    %127 = vrot.lane.b32.xlu0 %v29, 86
    %v128 = vpop.permute.xlu0 %127
    %129 = vrot.lane.b32.xlu0 %v30, 86
    %v130 = vpop.permute.xlu0 %129
    %131 = vrot.lane.b32.xlu0 %v31, 86
    %v132 = vpop.permute.xlu0 %131
    %133 = vrot.lane.b32.xlu0 %v32, 86
    %v134 = vpop.permute.xlu0 %133
    %vm135 = vcmask 703488
    %v136 = vsel %vm135, %v128, %v130
    %v137 = vsel %vm135, %v130, %v132
    %v138 = vsel %vm135, %v132, %v134
    %v142 = vld [vmem:[#allocation2] sm:$0xff]
    %v143 = vld [vmem:[#allocation2 + $0x8] sm:$0xff]
    %v144 = vld [vmem:[#allocation2 + $0x10] sm:$0xff]
    %v145 = vld [vmem:[#allocation2 + $0x18] sm:$0xff]
    %v146 = vld [vmem:[%s2] sm:$0xff]
    %v147 = vld [vmem:[%s2 + $0x8] sm:$0xff]
    %v148 = vld [vmem:[%s2 + $0x10] sm:$0xff]
    %v149 = vld [vmem:[%s2 + $0x18] sm:$0xff]
    %151 = vset.pattern.permute.xlu0 0
    %152 = vperm.xlu0 %151, %v146
    %v153 = vpop.permute.xlu0 %152
    %156 = vset.pattern.permute.xlu0 0
    %157 = vperm.xlu0 %156, %v147
    %v158 = vpop.permute.xlu0 %157
    %161 = vset.pattern.permute.xlu0 0
    %162 = vperm.xlu0 %161, %v148
    %v163 = vpop.permute.xlu0 %162
    %166 = vset.pattern.permute.xlu0 0
    %167 = vperm.xlu0 %166, %v149
    %v168 = vpop.permute.xlu0 %167
    %vm170 = vcmask 588800
    %v172 = vsel %vm170, %v142, 0
    %v175 = vsel %vm170, %v143, 0
    %v178 = vsel %vm170, %v144, 0
    %v181 = vsel %vm170, %v145, 0
    %183 = vmatprep.subr.mxu0 %v30
    %184 = vmatpush1.msra.mxu0 %v29
    %185 = vmatprep.subr.mxu0 %v44
    %186 = vmatpush1.msra.mxu0 %v43
    %187 = vmatprep.subr.mxu0 %v56
    %188 = vmatpush1.msra.mxu0 %v55
    %189 = vmatprep.subr.mxu0 %v68
    %190 = vmatpush1.msra.mxu0 %v67
    %191 = vmatprep.subr.mxu0 %v80
    %192 = vmatpush1.msra.mxu0 %v79
    %193 = vmatprep.subr.mxu0 %v92
    %194 = vmatpush1.msra.mxu0 %v91
    %195 = vmatprep.subr.mxu0 %v107
    %196 = vmatpush1.msra.mxu0 %v106
    %197 = vmatprep.subr.mxu0 %v122
    %198 = vmatpush1.msra.mxu0 %v121
    %199 = vmatprep.subr.mxu0 %v137
    %200 = vmatpush1.msra.mxu0 %v136
    %201 = vmatprep.subr.mxu0 0.0
    %202 = vmatpush1.msra.mxu0 0.0
    %203 = vmatprep.subr.mxu0 0.0
    %204 = vmatpush1.msra.mxu0 0.0
    %205 = vmatprep.subr.mxu0 0.0
    %206 = vmatpush1.msra.mxu0 0.0
    %207 = vmatprep.subr.mxu0 0.0
    %208 = vmatpush1.msra.mxu0 0.0
    %209 = vmatprep.subr.mxu0 0.0
    %210 = vmatpush1.msra.mxu0 0.0
    %211 = vmatprep.subr.mxu0 0.0
    %212 = vmatpush1.msra.mxu0 0.0
    %213 = vmatprep.subr.mxu0 0.0
    %214 = vmatpush1.msra.mxu0 0.0
    %215 = vmatprep.subr.mxu0 0.0
    %216 = vmatpush1.msra.mxu0 0.0
    %217 = vmatprep.subr.mxu0 0.0
    %218 = vmatpush1.msra.mxu0 0.0
    %219 = vmatprep.subr.mxu0 0.0
    %220 = vmatpush1.msra.mxu0 0.0
    %221 = vmatprep.subr.mxu0 0.0
    %222 = vmatpush1.msra.mxu0 0.0
    %223 = vmatprep.subr.mxu0 0.0
    %224 = vmatpush1.msra.mxu0 0.0
    %225 = vmatprep.subr.mxu0 0.0
    %226 = vmatpush1.msra.mxu0 0.0
    %227 = vmatprep.subr.mxu0 0.0
    %228 = vmatpush1.msra.mxu0 0.0
    %229 = vmatprep.subr.mxu0 0.0
    %230 = vmatpush1.msra.mxu0 0.0
    %231 = vmatprep.subr.mxu0 0.0
    %232 = vmatpush1.msra.mxu0 0.0
    %233 = vmatprep.subr.mxu0 0.0
    %234 = vmatpush1.msra.mxu0 0.0
    %235 = vmatprep.subr.mxu0 0.0
    %236 = vmatpush1.msra.mxu0 0.0
    %237 = vmatprep.subr.mxu0 0.0
    %238 = vmatpush1.msra.mxu0 0.0
    %239 = vmatprep.subr.mxu0 0.0
    %240 = vmatpush1.msra.mxu0 0.0
    %241 = vmatprep.subr.mxu0 0.0
    %242 = vmatpush1.msra.mxu0 0.0
    %243 = vmatprep.subr.mxu0 0.0
    %244 = vmatpush1.msra.mxu0 0.0
    %245 = vmatprep.subr.mxu0 0.0
    %246 = vmatpush1.msra.mxu0 0.0
    %247 = vmatprep.mubr.f32.mxu0 0.0
    %248 = vmatmul.mubr.f32.gmra.mrb[0].mxu0 %v172
    %v249 = vpop.f32.mrb[0].mxu0
    %v250 = vadd.f32 %v153, %v249
    %v251 = vpop.f32.mrb[0].mxu0
    %v252 = vadd.f32 %v153, %v251
    %253 = vmatprep.mubr.f32.mxu0 0.0
    %254 = vmatmul.mubr.f32.gmra.mrb[0].mxu0 %v175
    %v255 = vpop.f32.mrb[0].mxu0
    %v256 = vadd.f32 %v158, %v255
    %v257 = vpop.f32.mrb[0].mxu0
    %v258 = vadd.f32 %v158, %v257
    %259 = vmatprep.mubr.f32.mxu0 0.0
    %260 = vmatmul.mubr.f32.gmra.mrb[0].mxu0 %v178
    %v261 = vpop.f32.mrb[0].mxu0
    %v262 = vadd.f32 %v163, %v261
    %v263 = vpop.f32.mrb[0].mxu0
    %v264 = vadd.f32 %v163, %v263
    %265 = vmatprep.mubr.f32.mxu0 0.0
    %266 = vmatmul.mubr.f32.gmra.mrb[0].mxu0 %v181
    %v267 = vpop.f32.mrb[0].mxu0
    %v268 = vadd.f32 %v168, %v267
    %v269 = vpop.f32.mrb[0].mxu0
    %v270 = vadd.f32 %v168, %v269
    %271 = vdwg.mxu0
    %272 = vmatprep.subr.mxu0 0.0
    %273 = vmatpush1.msra.mxu0 %v31
    %274 = vmatprep.subr.mxu0 0.0
    %275 = vmatpush1.msra.mxu0 %v41
    %276 = vmatprep.subr.mxu0 0.0
    %277 = vmatpush1.msra.mxu0 %v53
    %278 = vmatprep.subr.mxu0 0.0
    %279 = vmatpush1.msra.mxu0 %v65
    %280 = vmatprep.subr.mxu0 0.0
    %281 = vmatpush1.msra.mxu0 %v77
    %282 = vmatprep.subr.mxu0 0.0
    %283 = vmatpush1.msra.mxu0 %v89
    %284 = vmatprep.subr.mxu0 0.0
    %285 = vmatpush1.msra.mxu0 %v108
    %286 = vmatprep.subr.mxu0 0.0
    %287 = vmatpush1.msra.mxu0 %v123
    %288 = vmatprep.subr.mxu0 0.0
    %289 = vmatpush1.msra.mxu0 %v138
    %290 = vmatprep.subr.mxu0 0.0
    %291 = vmatpush1.msra.mxu0 0.0
    %292 = vmatprep.subr.mxu0 0.0
    %293 = vmatpush1.msra.mxu0 0.0
    %294 = vmatprep.subr.mxu0 0.0
    %295 = vmatpush1.msra.mxu0 0.0
    %296 = vmatprep.subr.mxu0 0.0
    %297 = vmatpush1.msra.mxu0 0.0
    %298 = vmatprep.subr.mxu0 0.0
    %299 = vmatpush1.msra.mxu0 0.0
    %300 = vmatprep.subr.mxu0 0.0
    %301 = vmatpush1.msra.mxu0 0.0
    %302 = vmatprep.subr.mxu0 0.0
    %303 = vmatpush1.msra.mxu0 0.0
    %304 = vmatprep.subr.mxu0 0.0
    %305 = vmatpush1.msra.mxu0 0.0
    %306 = vmatprep.subr.mxu0 0.0
    %307 = vmatpush1.msra.mxu0 0.0
    %308 = vmatprep.subr.mxu0 0.0
    %309 = vmatpush1.msra.mxu0 0.0
    %310 = vmatprep.subr.mxu0 0.0
    %311 = vmatpush1.msra.mxu0 0.0
    %312 = vmatprep.subr.mxu0 0.0
    %313 = vmatpush1.msra.mxu0 0.0
    %314 = vmatprep.subr.mxu0 0.0
    %315 = vmatpush1.msra.mxu0 0.0
    %316 = vmatprep.subr.mxu0 0.0
    %317 = vmatpush1.msra.mxu0 0.0
    %318 = vmatprep.subr.mxu0 0.0
    %319 = vmatpush1.msra.mxu0 0.0
    %320 = vmatprep.subr.mxu0 0.0
    %321 = vmatpush1.msra.mxu0 0.0
    %322 = vmatprep.subr.mxu0 0.0
    %323 = vmatpush1.msra.mxu0 0.0
    %324 = vmatprep.subr.mxu0 0.0
    %325 = vmatpush1.msra.mxu0 0.0
    %326 = vmatprep.subr.mxu0 0.0
    %327 = vmatpush1.msra.mxu0 0.0
    %328 = vmatprep.subr.mxu0 0.0
    %329 = vmatpush1.msra.mxu0 0.0
    %330 = vmatprep.subr.mxu0 0.0
    %331 = vmatpush1.msra.mxu0 0.0
    %332 = vmatprep.subr.mxu0 0.0
    %333 = vmatpush1.msra.mxu0 0.0
    %334 = vmatprep.subr.mxu0 0.0
    %335 = vmatpush1.msra.mxu0 0.0
    %336 = vmatprep.mubr.f32.mxu0 0.0
    %337 = vmatmul.mubr.f32.gmra.mrb[0].mxu0 %v172
    %v338 = vpop.f32.mrb[0].mxu0
    %v339 = vadd.f32 %v153, %v338
    %v340 = vpop.f32.mrb[0].mxu0
    %341 = vmatprep.mubr.f32.mxu0 0.0
    %342 = vmatmul.mubr.f32.gmra.mrb[0].mxu0 %v175
    %v343 = vpop.f32.mrb[0].mxu0
    %v344 = vadd.f32 %v158, %v343
    %v345 = vpop.f32.mrb[0].mxu0
    %346 = vmatprep.mubr.f32.mxu0 0.0
    %347 = vmatmul.mubr.f32.gmra.mrb[0].mxu0 %v178
    %v348 = vpop.f32.mrb[0].mxu0
    %v349 = vadd.f32 %v163, %v348
    %v350 = vpop.f32.mrb[0].mxu0
    %351 = vmatprep.mubr.f32.mxu0 0.0
    %352 = vmatmul.mubr.f32.gmra.mrb[0].mxu0 %v181
    %v353 = vpop.f32.mrb[0].mxu0
    %v354 = vadd.f32 %v168, %v353
    %v355 = vpop.f32.mrb[0].mxu0
    %356 = vdwg.mxu0
    %v357 = vmax.f32 %v250, 0.0
    %v358 = vmax.f32 %v252, 0.0
    %v359 = vmax.f32 %v339, 0.0
    %v360 = vmax.f32 %v256, 0.0
    %v361 = vmax.f32 %v258, 0.0
    %v362 = vmax.f32 %v344, 0.0
    %v363 = vmax.f32 %v262, 0.0
    %v364 = vmax.f32 %v264, 0.0
    %v365 = vmax.f32 %v349, 0.0
    %v366 = vmax.f32 %v268, 0.0
    %v367 = vmax.f32 %v270, 0.0
    %v368 = vmax.f32 %v354, 0.0
    %369 = vst [vmem:[#allocation5] sm:$0xff] %v357
    %370 = vst [vmem:[#allocation5 + $0x8] sm:$0xff] %v358
    %vm371 = vcmask 850944
    %372 = vst.msk [vmem:[#allocation5 + $0x10] sm:$0xff] %vm371, %v359
    %373 = vst [vmem:[#allocation5 + $0x18] sm:$0xff] %v360
    %374 = vst [vmem:[#allocation5 + $0x20] sm:$0xff] %v361
    %375 = vst.msk [vmem:[#allocation5 + $0x28] sm:$0xff] %vm371, %v362
    %376 = vst [vmem:[#allocation5 + $0x30] sm:$0xff] %v363
    %377 = vst [vmem:[#allocation5 + $0x38] sm:$0xff] %v364
    %378 = vst.msk [vmem:[#allocation5 + $0x40] sm:$0xff] %vm371, %v365
    %379 = vst [vmem:[#allocation5 + $0x48] sm:$0xff] %v366
    %380 = vst [vmem:[#allocation5 + $0x50] sm:$0xff] %v367
    %381 = vst.msk [vmem:[#allocation5 + $0x58] sm:$0xff] %vm371, %v368
    // Predicated region
    $region18: #{tpu_custom_call.1} parent=1 // pred_check
      _
    $region19: #{tpu_custom_call.1} parent=1 // pred_check_branch
      %383 = sbr.rel (0) target = $region21
    $region20: #{tpu_custom_call.1} parent=1 // pred_region
      %s385 = ssub.s32 1536, 1536
      %386 = vsyncadd [#allocation4], %s385
      %s387 = sshll.u32 [#allocation5], 4
      %s388 = int_to_ptr.vmem [resolvable:$true] %s387
      %393 = dma.vmem_to_hbm [thread:$0]  %s388, 1536, %s3, [#allocation4], 384, 384, 24
    $region21: #{tpu_custom_call.1} parent=1 // pred_fallthru
      _
    // Predicated region
    $region22: #{tpu_custom_call.1} parent=1 // pred_check
      _
    $region23: #{tpu_custom_call.1} parent=1 // pred_check_branch
      %395 = sbr.rel (0) target = $region25
    $region24: #{tpu_custom_call.1} parent=1 // pred_region
      %396 = dma.done [#allocation4], 1536
    $region25: #{tpu_custom_call.1} parent=1 // pred_fallthru
      _
    %397 = vsyncpa [#allocation3], 1
    %398 = vsyncpa [#allocation4], 1

</llo_original>
